<compile_context>
chip_gen: v5e
topology: v5e:2x2
jax: 0.10.0
libtpu: 0.0.40
codegen_flags: <defaults>
</compile_context>

<pallas_src>
import functools

import jax
import jax.numpy as jnp
from jax.experimental import pallas as pl
from jax.experimental.pallas import tpu as pltpu


def _round_up(x: int, m: int) -> int:
    return (x + m - 1) // m * m


def _balanced_row_tile(M: int, tm_max: int):
    """Row tile <= tm_max (multiple of 8) minimizing padded rows.

    Returns (tm, Mp) with Mp = tm * num_tiles >= M.
    """
    M = max(M, 1)
    g = pl.cdiv(M, tm_max)                 # number of row tiles
    tm = _round_up(-(-M // g), 8)          # ceil(M / g) rounded up to sublane (8)
    return tm, tm * g


# ---------------------------------------------------------------------------
# Path A: fully fused MLP (all weights VMEM-resident, one pallas_call).
# ---------------------------------------------------------------------------
def _fused_mlp_kernel(*refs, num_layers: int):
    # refs = (x_ref, w0, b0, w1, b1, ..., o_ref)
    x_ref = refs[0]
    o_ref = refs[-1]
    act = x_ref[...]
    for l in range(num_layers):
        w = refs[1 + 2 * l][...]
        b = refs[2 + 2 * l][...]           # (1, N_l) -> broadcasts over rows
        act = jnp.dot(act, w, preferred_element_type=jnp.float32) + b
        if l < num_layers - 1:
            act = jnp.maximum(act, 0.0)
    o_ref[...] = act.astype(o_ref.dtype)


def mlp_fused_pallas(x2d: jax.Array, params, *, tm_max: int = 512) -> jax.Array:
    """Runs the whole MLP in one kernel. params: list of (w:(K,N), b:(1,N))."""
    M, K = x2d.shape
    num_layers = len(params)
    N_out = params[-1][0].shape[1]

    # Balanced row tiling (multiple of 8, waste < 8 rows per tile).
    tm, Mp = _balanced_row_tile(M, tm_max)
    x_p = x2d if Mp == M else jnp.pad(x2d, ((0, Mp - M), (0, 0)))

    # Lane-dense output: pad the final layer's N up to a multiple of 128 so the
    # HBM store is unmasked (padded columns come from zero-padded weight/bias
    # and are sliced off afterwards).
    Np_out = _round_up(N_out, 128)

    operands = [x_p]
    in_specs = [pl.BlockSpec((tm, K), lambda i: (i, 0))]
    flops = 0
    bytes_accessed = 4 * Mp * K
    for l, (w, b2d) in enumerate(params):
        k_l, n_l = w.shape
        if l == num_layers - 1 and n_l != Np_out:
            w = jnp.pad(w, ((0, 0), (0, Np_out - n_l)))
            b2d = jnp.pad(b2d, ((0, 0), (0, Np_out - n_l)))
            n_l = Np_out
        operands += [w, b2d]
        in_specs += [
            pl.BlockSpec((k_l, n_l), lambda i: (0, 0)),   # full weight, VMEM-resident
            pl.BlockSpec((1, n_l), lambda i: (0, 0)),     # bias row
        ]
        flops += 2 * Mp * k_l * n_l
        bytes_accessed += 4 * (k_l * n_l + n_l)
    bytes_accessed += 4 * Mp * Np_out

    out = pl.pallas_call(
        functools.partial(_fused_mlp_kernel, num_layers=num_layers),
        out_shape=jax.ShapeDtypeStruct((Mp, Np_out), x2d.dtype),
        grid_spec=pltpu.PrefetchScalarGridSpec(
            num_scalar_prefetch=0,
            grid=(Mp // tm,),
            in_specs=in_specs,
            out_specs=pl.BlockSpec((tm, Np_out), lambda i: (i, 0)),
        ),
        compiler_params=pltpu.CompilerParams(
            dimension_semantics=("parallel",),
            vmem_limit_bytes=40 * 1024 * 1024,
        ),
        cost_estimate=pl.CostEstimate(
            flops=flops, transcendentals=0, bytes_accessed=bytes_accessed),
    )(*operands)
    return out[:M, :N_out]


# ---------------------------------------------------------------------------
# Path B: general tiled Linear (+bias, +optional ReLU) with f32 accumulator.
# ---------------------------------------------------------------------------
def _linear_tiled_kernel(x_ref, w_ref, b_ref, o_ref, acc_ref, *, apply_relu: bool):
    k = pl.program_id(2)

    @pl.when(k == 0)
    def _():
        acc_ref[...] = jnp.zeros_like(acc_ref)

    acc_ref[...] += jnp.dot(x_ref[...], w_ref[...],
                            preferred_element_type=jnp.float32)

    @pl.when(k == pl.num_programs(2) - 1)
    def _():
        y = acc_ref[...] + b_ref[...]
        if apply_relu:
            y = jnp.maximum(y, 0.0)
        o_ref[...] = y.astype(o_ref.dtype)


def linear_pallas(x2d: jax.Array, w: jax.Array, b2d: jax.Array, apply_relu: bool,
                  *, tm_max: int = 256, tn: int = 512, tk: int = 512) -> jax.Array:
    """x2d: (M, K), w: (K, N), b2d: (1, N). Returns (M, N). Arbitrary M/K/N."""
    M, K = x2d.shape
    Kw, N = w.shape
    assert K == Kw

    # Balanced row tile; clamp N/K tiles to (padded) problem with 128 alignment.
    tm, Mp = _balanced_row_tile(M, tm_max)
    tn = min(tn, _round_up(N, 128))
    tk = min(tk, _round_up(K, 128))
    Np, Kp = _round_up(N, tn), _round_up(K, tk)

    x_p = x2d if (Mp, Kp) == (M, K) else jnp.pad(x2d, ((0, Mp - M), (0, Kp - K)))
    w_p = w if (Kp, Np) == (K, N) else jnp.pad(w, ((0, Kp - K), (0, Np - N)))
    b_p = b2d if Np == N else jnp.pad(b2d, ((0, 0), (0, Np - N)))

    out = pl.pallas_call(
        functools.partial(_linear_tiled_kernel, apply_relu=apply_relu),
        out_shape=jax.ShapeDtypeStruct((Mp, Np), x2d.dtype),
        grid_spec=pltpu.PrefetchScalarGridSpec(
            num_scalar_prefetch=0,
            grid=(Mp // tm, Np // tn, Kp // tk),
            in_specs=[
                pl.BlockSpec((tm, tk), lambda i, j, k: (i, k)),   # x tile
                pl.BlockSpec((tk, tn), lambda i, j, k: (k, j)),   # w tile
                pl.BlockSpec((1, tn), lambda i, j, k: (0, j)),    # bias tile
            ],
            out_specs=pl.BlockSpec((tm, tn), lambda i, j, k: (i, j)),
            scratch_shapes=[pltpu.VMEM((tm, tn), jnp.float32)],
        ),
        compiler_params=pltpu.CompilerParams(
            dimension_semantics=("parallel", "parallel", "arbitrary")),
        cost_estimate=pl.CostEstimate(
            flops=2 * Mp * Kp * Np, transcendentals=0,
            bytes_accessed=4 * (Mp * Kp + Kp * Np + Mp * Np)),
    )(x_p, w_p, b_p)
    return out[:M, :N]


# ---------------------------------------------------------------------------
# Module
# ---------------------------------------------------------------------------
class MLP:
    """JAX/Pallas port of the PyTorch MLP (stack of Linear layers, ReLU on all but last)."""

    # Below this total weight footprint, keep every weight VMEM-resident and fuse
    # the whole MLP into one pallas_call (safe for v5e/v6e/v7x with the explicit
    # 40 MiB VMEM limit set above: 2x-buffered weights + activation tiles fit).
    _FUSE_WEIGHT_BYTES = 6 * 1024 * 1024

    def __init__(self, input_dim, hidden_dim, output_dim, num_layers, key):
        self.num_layers = num_layers
        h = [hidden_dim] * (num_layers - 1)
        self.params = []
        for n_in, n_out in zip([input_dim] + h, h + [output_dim]):
            key, kw, kb = jax.random.split(key, 3)
            # Init mirroring PyTorch Linear's uniform(-1/sqrt(fan_in), 1/sqrt(fan_in)).
            bound = 1.0 / (n_in ** 0.5)
            w = jax.random.uniform(kw, (n_in, n_out), jnp.float32, -bound, bound)
            b = jax.random.uniform(kb, (1, n_out), jnp.float32, -bound, bound)
            self.params.append((w, b))
        self._weight_bytes = sum(w.size * 4 + b.size * 4 for w, b in self.params)

    def __call__(self, x):
        lead_shape = x.shape[:-1]
        x2d = x.reshape(-1, x.shape[-1])
        if self._weight_bytes <= self._FUSE_WEIGHT_BYTES:
            y = mlp_fused_pallas(x2d, self.params)
        else:
            y = x2d
            for i, (w, b) in enumerate(self.params):
                y = linear_pallas(y, w, b, apply_relu=(i < self.num_layers - 1))
        return y.reshape(*lead_shape, y.shape[-1])


def _reference(mlp: MLP, x):
    lead_shape = x.shape[:-1]
    y = x.reshape(-1, x.shape[-1])
    for i, (w, b) in enumerate(mlp.params):
        y = y @ w + b
        if i < mlp.num_layers - 1:
            y = jnp.maximum(y, 0.0)
    return y.reshape(*lead_shape, y.shape[-1])


if __name__ == "__main__":
    key = jax.random.PRNGKey(0)
    k_x, k_p = jax.random.split(key)

    batch, seq = 2, 8
    input_dim, hidden_dim, output_dim, num_layers = 32, 32, 16, 3

    x = jax.random.normal(k_x, (batch, seq, input_dim), jnp.float32)
    mlp = MLP(input_dim, hidden_dim, output_dim, num_layers, k_p)

    # Fused path (selected automatically for this small config).
    out = mlp(x)
    out = jax.block_until_ready(out)
    ref = _reference(mlp, x)
    assert out.shape == (batch, seq, output_dim), out.shape
    assert jnp.allclose(out, ref, atol=1e-4, rtol=1e-4), "fused MLP mismatch vs reference"

    # Also exercise the general tiled-linear path (the large-model fallback).
    x2d = x.reshape(-1, input_dim)
    w0, b0 = mlp.params[0]
    lin = jax.block_until_ready(linear_pallas(x2d, w0, b0, apply_relu=True))
    lin_ref = jnp.maximum(x2d @ w0 + b0, 0.0)
    assert jnp.allclose(lin, lin_ref, atol=1e-4, rtol=1e-4), "tiled linear mismatch"

    print("KERNEL_OK")
</pallas_src>

<mosaic_0001>
module attributes {stable_mosaic.version = 11 : i64} {
  func.func @_fused_mlp_kernel(%arg0: i32, %arg1: memref<16x32xf32, #tpu.memory_space<vmem>>, %arg2: memref<32x32xf32, #tpu.memory_space<vmem>>, %arg3: memref<1x32xf32, #tpu.memory_space<vmem>>, %arg4: memref<32x32xf32, #tpu.memory_space<vmem>>, %arg5: memref<1x32xf32, #tpu.memory_space<vmem>>, %arg6: memref<32x128xf32, #tpu.memory_space<vmem>>, %arg7: memref<1x128xf32, #tpu.memory_space<vmem>>, %arg8: memref<16x128xf32, #tpu.memory_space<vmem>>) attributes {dimension_semantics = [#tpu.dimension_semantics<parallel>], iteration_bounds = array<i64: 1>, scalar_prefetch = 0 : i64, scratch_operands = 0 : i64, tpu.core_type = #tpu.core_type<tc>, window_params = [{transform_indices = @transform_0, window_bounds = array<i64: 16, 32>}, {pipeline_mode = #tpu.pipeline_mode<synchronous>, transform_indices = @transform_1, window_bounds = array<i64: 32, 32>}, {pipeline_mode = #tpu.pipeline_mode<synchronous>, transform_indices = @transform_2, window_bounds = array<i64: 1, 32>}, {pipeline_mode = #tpu.pipeline_mode<synchronous>, transform_indices = @transform_3, window_bounds = array<i64: 32, 32>}, {pipeline_mode = #tpu.pipeline_mode<synchronous>, transform_indices = @transform_4, window_bounds = array<i64: 1, 32>}, {pipeline_mode = #tpu.pipeline_mode<synchronous>, transform_indices = @transform_5, window_bounds = array<i64: 32, 128>}, {pipeline_mode = #tpu.pipeline_mode<synchronous>, transform_indices = @transform_6, window_bounds = array<i64: 1, 128>}, {transform_indices = @transform_7, window_bounds = array<i64: 16, 128>}]} {
    %c0 = arith.constant 0 : index
    %c0_0 = arith.constant 0 : index
    %0 = vector.load %arg1[%c0, %c0_0] : memref<16x32xf32, #tpu.memory_space<vmem>>, vector<16x32xf32>
    %c0_1 = arith.constant 0 : index
    %c0_2 = arith.constant 0 : index
    %1 = vector.load %arg2[%c0_1, %c0_2] : memref<32x32xf32, #tpu.memory_space<vmem>>, vector<32x32xf32>
    %c0_3 = arith.constant 0 : index
    %c0_4 = arith.constant 0 : index
    %2 = vector.load %arg3[%c0_3, %c0_4] : memref<1x32xf32, #tpu.memory_space<vmem>>, vector<1x32xf32>
    %cst = arith.constant dense<0.000000e+00> : vector<16x32xf32>
    %3 = tpu.matmul %0, %1, %cst {dimension_numbers = #tpu.dot_dimension_numbers<[1], [0], [0], [1], [0, 0, 1, 1], [], []>} : vector<16x32xf32>, vector<32x32xf32>, vector<16x32xf32> -> vector<16x32xf32>
    %4 = vector.broadcast %2 : vector<1x32xf32> to vector<16x32xf32>
    %5 = arith.addf %3, %4 : vector<16x32xf32>
    %cst_5 = arith.constant 0.000000e+00 : f32
    %6 = vector.broadcast %cst_5 : f32 to vector<16x32xf32>
    %7 = arith.maximumf %5, %6 : vector<16x32xf32>
    %c0_6 = arith.constant 0 : index
    %c0_7 = arith.constant 0 : index
    %8 = vector.load %arg4[%c0_6, %c0_7] : memref<32x32xf32, #tpu.memory_space<vmem>>, vector<32x32xf32>
    %c0_8 = arith.constant 0 : index
    %c0_9 = arith.constant 0 : index
    %9 = vector.load %arg5[%c0_8, %c0_9] : memref<1x32xf32, #tpu.memory_space<vmem>>, vector<1x32xf32>
    %cst_10 = arith.constant dense<0.000000e+00> : vector<16x32xf32>
    %10 = tpu.matmul %7, %8, %cst_10 {dimension_numbers = #tpu.dot_dimension_numbers<[1], [0], [0], [1], [0, 0, 1, 1], [], []>} : vector<16x32xf32>, vector<32x32xf32>, vector<16x32xf32> -> vector<16x32xf32>
    %11 = vector.broadcast %9 : vector<1x32xf32> to vector<16x32xf32>
    %12 = arith.addf %10, %11 : vector<16x32xf32>
    %cst_11 = arith.constant 0.000000e+00 : f32
    %13 = vector.broadcast %cst_11 : f32 to vector<16x32xf32>
    %14 = arith.maximumf %12, %13 : vector<16x32xf32>
    %c0_12 = arith.constant 0 : index
    %c0_13 = arith.constant 0 : index
    %15 = vector.load %arg6[%c0_12, %c0_13] : memref<32x128xf32, #tpu.memory_space<vmem>>, vector<32x128xf32>
    %c0_14 = arith.constant 0 : index
    %c0_15 = arith.constant 0 : index
    %16 = vector.load %arg7[%c0_14, %c0_15] : memref<1x128xf32, #tpu.memory_space<vmem>>, vector<1x128xf32>
    %cst_16 = arith.constant dense<0.000000e+00> : vector<16x128xf32>
    %17 = tpu.matmul %14, %15, %cst_16 {dimension_numbers = #tpu.dot_dimension_numbers<[1], [0], [0], [1], [0, 0, 1, 1], [], []>} : vector<16x32xf32>, vector<32x128xf32>, vector<16x128xf32> -> vector<16x128xf32>
    %18 = vector.broadcast %16 : vector<1x128xf32> to vector<16x128xf32>
    %19 = arith.addf %17, %18 : vector<16x128xf32>
    %c0_17 = arith.constant 0 : index
    %c0_18 = arith.constant 0 : index
    %20 = vector.load %arg8[%c0_17, %c0_18] : memref<16x128xf32, #tpu.memory_space<vmem>>, vector<16x128xf32>
    tpu.vector_store %arg8[%c0_17, %c0_18], %19 {strides = array<i32>} : memref<16x128xf32, #tpu.memory_space<vmem>>, vector<16x128xf32>,
    return
  }
  func.func @transform_0(%arg0: i32) -> (i32, i32) {
    %c0_i32 = arith.constant 0 : i32
    %c0_i32_0 = arith.constant 0 : i32
    return %arg0, %c0_i32 : i32, i32
  }
  func.func @transform_1(%arg0: i32) -> (i32, i32) {
    %c0_i32 = arith.constant 0 : i32
    %c0_i32_0 = arith.constant 0 : i32
    %c0_i32_1 = arith.constant 0 : i32
    return %c0_i32, %c0_i32_0 : i32, i32
  }
  func.func @transform_2(%arg0: i32) -> (i32, i32) {
    %c0_i32 = arith.constant 0 : i32
    %c0_i32_0 = arith.constant 0 : i32
    %c0_i32_1 = arith.constant 0 : i32
    return %c0_i32, %c0_i32_0 : i32, i32
  }
  func.func @transform_3(%arg0: i32) -> (i32, i32) {
    %c0_i32 = arith.constant 0 : i32
    %c0_i32_0 = arith.constant 0 : i32
    %c0_i32_1 = arith.constant 0 : i32
    return %c0_i32, %c0_i32_0 : i32, i32
  }
  func.func @transform_4(%arg0: i32) -> (i32, i32) {
    %c0_i32 = arith.constant 0 : i32
    %c0_i32_0 = arith.constant 0 : i32
    %c0_i32_1 = arith.constant 0 : i32
    return %c0_i32, %c0_i32_0 : i32, i32
  }
  func.func @transform_5(%arg0: i32) -> (i32, i32) {
    %c0_i32 = arith.constant 0 : i32
    %c0_i32_0 = arith.constant 0 : i32
    %c0_i32_1 = arith.constant 0 : i32
    return %c0_i32, %c0_i32_0 : i32, i32
  }
  func.func @transform_6(%arg0: i32) -> (i32, i32) {
    %c0_i32 = arith.constant 0 : i32
    %c0_i32_0 = arith.constant 0 : i32
    %c0_i32_1 = arith.constant 0 : i32
    return %c0_i32, %c0_i32_0 : i32, i32
  }
  func.func @transform_7(%arg0: i32) -> (i32, i32) {
    %c0_i32 = arith.constant 0 : i32
    %c0_i32_0 = arith.constant 0 : i32
    return %arg0, %c0_i32 : i32, i32
  }
}

</mosaic_0001>

<llo_original>
// kernel: tpu_custom_call.1
$region0: #{tpu_custom_call.1}
  #allocation0 [shape = 'u32[]', space=smem, size = 0x4, offset = 0x4, fixed_abs, tag = 'smem constant byte address 0x4 - core index']
  #allocation1 [shape = 'u32[72,128]{1,0:T(1,128)}', space=vmem, size = 0x9000, scoped, tag = 'internal scratch']
  %s0 = inlined_call_operand.hbm [shape: f32[16,32], index: 0, kind: input, shape index: {}]
  %s1 = inlined_call_operand.hbm [shape: f32[32,32], index: 1, kind: input, shape index: {}]
  %s2 = inlined_call_operand.vmem [shape: f32[1,32], index: 2, kind: input, shape index: {}]
  %s3 = inlined_call_operand.hbm [shape: f32[32,32], index: 3, kind: input, shape index: {}]
  %s4 = inlined_call_operand.vmem [shape: f32[1,32], index: 4, kind: input, shape index: {}]
  %s5 = inlined_call_operand.hbm [shape: f32[32,128], index: 5, kind: input, shape index: {}]
  %s6 = inlined_call_operand.vmem [shape: f32[1,128], index: 6, kind: input, shape index: {}]
  %s7 = inlined_call_operand.hbm [shape: f32[16,128], index: 7, kind: output, shape index: {}]
  %s8 = sld [smem:[#allocation0]]
  $region54: #{tpu_custom_call.1} parent=0
    _
  %s10 = ssub.s32 1, %s8
  %s11 = scalar_select 0, %s10, %s8
  $region1: #{tpu_custom_call.1} parent=0
    #allocation2 [shape = 'u8[8192]{0}', space=vmem, size = 0x2000, scoped, tag = 'input window, operand 0, single buffered']
    #allocation3 [shape = 's32[1]{0}', space=sflag, size = 0x4, scoped, tag = 'scoped memory for tpu_custom_call.1']
    #allocation4 [shape = 's32[1]{0}', space=sflag, size = 0x4, scoped, tag = 'scoped memory for tpu_custom_call.1']
    #allocation5 [shape = 'u8[16384]{0}', space=vmem, size = 0x4000, scoped, tag = 'input window, operand 1, single buffered']
    #allocation6 [shape = 's32[1]{0}', space=sflag, size = 0x4, scoped, tag = 'scoped memory for tpu_custom_call.1']
    #allocation7 [shape = 'u8[16384]{0}', space=vmem, size = 0x4000, scoped, tag = 'input window, operand 3, single buffered']
    #allocation8 [shape = 'u8[16384]{0}', space=vmem, size = 0x4000, scoped, tag = 'input window, operand 5, single buffered']
    #allocation9 [shape = 's32[1]{0}', space=sflag, size = 0x4, scoped, tag = 'scoped memory for tpu_custom_call.1']
    #allocation10 [shape = 'u8[8192]{0}', space=vmem, size = 0x2000, scoped, tag = 'output window, operand 0, single buffered']
    %12 = vsyncpa [#allocation3], 0
    %13 = vsyncpa [#allocation6], 0
    %14 = vsyncpa [#allocation9], 0
    %15 = vsyncpa [#allocation4], 0
    // Predicated region
    $region2: #{tpu_custom_call.1} parent=1 // pred_check
      _
    $region3: #{tpu_custom_call.1} parent=1 // pred_check_branch
      %17 = sbr.rel (0) target = $region5
    $region4: #{tpu_custom_call.1} parent=1 // pred_region
      %19 = vsyncadd [#allocation3], 0
      %s20 = sshll.u32 %s0, 4
      %s21 = int_to_ptr.hbm [resolvable:$true] %s20
      %s22 = sshll.u32 [#allocation2], 4
      %s23 = int_to_ptr.vmem [resolvable:$true] %s22
      %28 = dma.hbm_to_vmem [thread:$0]  %s21, 256, %s23, [#allocation3], 128, 128, 8
    $region5: #{tpu_custom_call.1} parent=1 // pred_fallthru
      _
    // Predicated region
    $region6: #{tpu_custom_call.1} parent=1 // pred_check
      _
    $region7: #{tpu_custom_call.1} parent=1 // pred_check_branch
      %30 = sbr.rel (0) target = $region9
    $region8: #{tpu_custom_call.1} parent=1 // pred_region
      %32 = vsyncadd [#allocation6], 0
      %s33 = sshll.u32 %s1, 4
      %s34 = int_to_ptr.hbm [resolvable:$true] %s33
      %s35 = sshll.u32 [#allocation5], 4
      %s36 = int_to_ptr.vmem [resolvable:$true] %s35
      %41 = dma.hbm_to_vmem [thread:$0]  %s34, 512, %s36, [#allocation6], 128, 128, 8
    $region9: #{tpu_custom_call.1} parent=1 // pred_fallthru
      _
    // Predicated region
    $region10: #{tpu_custom_call.1} parent=1 // pred_check
      _
    $region11: #{tpu_custom_call.1} parent=1 // pred_check_branch
      %43 = sbr.rel (0) target = $region13
    $region12: #{tpu_custom_call.1} parent=1 // pred_region
      _
    $region13: #{tpu_custom_call.1} parent=1 // pred_fallthru
      _
    // Predicated region
    $region14: #{tpu_custom_call.1} parent=1 // pred_check
      _
    $region15: #{tpu_custom_call.1} parent=1 // pred_check_branch
      %45 = sbr.rel (0) target = $region17
    $region16: #{tpu_custom_call.1} parent=1 // pred_region
      %47 = vsyncadd [#allocation6], 0
      %s48 = sshll.u32 %s3, 4
      %s49 = int_to_ptr.hbm [resolvable:$true] %s48
      %s50 = sshll.u32 [#allocation7], 4
      %s51 = int_to_ptr.vmem [resolvable:$true] %s50
      %56 = dma.hbm_to_vmem [thread:$0]  %s49, 512, %s51, [#allocation6], 128, 128, 8
    $region17: #{tpu_custom_call.1} parent=1 // pred_fallthru
      _
    // Predicated region
    $region18: #{tpu_custom_call.1} parent=1 // pred_check
      _
    $region19: #{tpu_custom_call.1} parent=1 // pred_check_branch
      %58 = sbr.rel (0) target = $region21
    $region20: #{tpu_custom_call.1} parent=1 // pred_region
      _
    $region21: #{tpu_custom_call.1} parent=1 // pred_fallthru
      _
    // Predicated region
    $region22: #{tpu_custom_call.1} parent=1 // pred_check
      _
    $region23: #{tpu_custom_call.1} parent=1 // pred_check_branch
      %60 = sbr.rel (0) target = $region25
    $region24: #{tpu_custom_call.1} parent=1 // pred_region
      %62 = vsyncadd [#allocation9], 0
      %s63 = sshll.u32 %s5, 4
      %s64 = int_to_ptr.hbm [resolvable:$true] %s63
      %s65 = sshll.u32 [#allocation8], 4
      %s66 = int_to_ptr.vmem [resolvable:$true] %s65
      %71 = dma.hbm_to_vmem [thread:$0]  %s64, 512, %s66, [#allocation9], 128, 128, 8
    $region25: #{tpu_custom_call.1} parent=1 // pred_fallthru
      _
    // Predicated region
    $region26: #{tpu_custom_call.1} parent=1 // pred_check
      _
    $region27: #{tpu_custom_call.1} parent=1 // pred_check_branch
      %73 = sbr.rel (0) target = $region29
    $region28: #{tpu_custom_call.1} parent=1 // pred_region
      _
    $region29: #{tpu_custom_call.1} parent=1 // pred_fallthru
      _
    // Predicated region
    $region30: #{tpu_custom_call.1} parent=1 // pred_check
      _
    $region31: #{tpu_custom_call.1} parent=1 // pred_check_branch
      %75 = sbr.rel (0) target = $region33
    $region32: #{tpu_custom_call.1} parent=1 // pred_region
      %77 = dma.done [#allocation3], 256
    $region33: #{tpu_custom_call.1} parent=1 // pred_fallthru
      _
    // Predicated region
    $region34: #{tpu_custom_call.1} parent=1 // pred_check
      _
    $region35: #{tpu_custom_call.1} parent=1 // pred_check_branch
      %79 = sbr.rel (0) target = $region37
    $region36: #{tpu_custom_call.1} parent=1 // pred_region
      %81 = dma.done [#allocation6], 512
    $region37: #{tpu_custom_call.1} parent=1 // pred_fallthru
      _
    // Predicated region
    $region38: #{tpu_custom_call.1} parent=1 // pred_check
      _
    $region39: #{tpu_custom_call.1} parent=1 // pred_check_branch
      %83 = sbr.rel (0) target = $region41
    $region40: #{tpu_custom_call.1} parent=1 // pred_region
      %85 = dma.done [#allocation6], 512
    $region41: #{tpu_custom_call.1} parent=1 // pred_fallthru
      _
    // Predicated region
    $region42: #{tpu_custom_call.1} parent=1 // pred_check
      _
    $region43: #{tpu_custom_call.1} parent=1 // pred_check_branch
      %87 = sbr.rel (0) target = $region45
    $region44: #{tpu_custom_call.1} parent=1 // pred_region
      %89 = dma.done [#allocation9], 512
    $region45: #{tpu_custom_call.1} parent=1 // pred_fallthru
      _
    %v90 = vld [vmem:[#allocation2] sm:$0xff]
    %v91 = vld [vmem:[#allocation2 + $0x8] sm:$0xff]
    %v92 = vld [vmem:[#allocation5] sm:$0xff]
    %v93 = vld [vmem:[#allocation5 + $0x8] sm:$0xff]
    %v94 = vld [vmem:[#allocation5 + $0x10] sm:$0xff]
    %v95 = vld [vmem:[#allocation5 + $0x18] sm:$0xff]
    %v96 = vld [vmem:[%s2] sm:$0x1]
    %v98 = vperm.slane %v96, 0
    %vm100 = vcmask 261120
    %v102 = vsel %vm100, %v90, 0
    %v105 = vsel %vm100, %v91, 0
    %107 = vmatpush.msra.mxu0 0.0
    %108 = vmatpush.msra.mxu0 0.0
    %109 = vmatpush.msra.mxu0 0.0
    %110 = vmatpush.msra.mxu0 0.0
    %111 = vmatpush.msra.mxu0 0.0
    %112 = vmatpush.msra.mxu0 0.0
    %113 = vmatpush.msra.mxu0 0.0
    %114 = vmatpush.msra.mxu0 0.0
    %115 = vmatpush.msra.mxu0 0.0
    %116 = vmatpush.msra.mxu0 0.0
    %117 = vmatpush.msra.mxu0 0.0
    %118 = vmatpush.msra.mxu0 0.0
    %119 = vmatpush.msra.mxu0 %v95
    %120 = vmatpush.msra.mxu0 %v94
    %121 = vmatpush.msra.mxu0 %v93
    %122 = vmatpush.msra.mxu0 %v92
    %123 = vmatmul.f32.gmra.mxu0 %v102
    %v124 = vpop.f32.mrf.mxu0
    %v125 = vadd.f32 %v98, %v124
    %126 = vmatmul.f32.gmra.mxu0 %v105
    %v127 = vpop.f32.mrf.mxu0
    %v128 = vadd.f32 %v98, %v127
    %129 = vdwg.mxu0
    %v130 = vmax.f32 %v125, 0.0
    %v131 = vmax.f32 %v128, 0.0
    %v132 = vld [vmem:[#allocation7] sm:$0xff]
    %v133 = vld [vmem:[#allocation7 + $0x8] sm:$0xff]
    %v134 = vld [vmem:[#allocation7 + $0x10] sm:$0xff]
    %v135 = vld [vmem:[#allocation7 + $0x18] sm:$0xff]
    %v136 = vld [vmem:[%s4] sm:$0x1]
    %v138 = vperm.slane %v136, 0
    %v141 = vsel %vm100, %v130, 0
    %v144 = vsel %vm100, %v131, 0
    %146 = vmatpush.msra.mxu0 0.0
    %147 = vmatpush.msra.mxu0 0.0
    %148 = vmatpush.msra.mxu0 0.0
    %149 = vmatpush.msra.mxu0 0.0
    %150 = vmatpush.msra.mxu0 0.0
    %151 = vmatpush.msra.mxu0 0.0
    %152 = vmatpush.msra.mxu0 0.0
    %153 = vmatpush.msra.mxu0 0.0
    %154 = vmatpush.msra.mxu0 0.0
    %155 = vmatpush.msra.mxu0 0.0
    %156 = vmatpush.msra.mxu0 0.0
    %157 = vmatpush.msra.mxu0 0.0
    %158 = vmatpush.msra.mxu0 %v135
    %159 = vmatpush.msra.mxu0 %v134
    %160 = vmatpush.msra.mxu0 %v133
    %161 = vmatpush.msra.mxu0 %v132
    %162 = vmatmul.f32.gmra.mxu0 %v141
    %v163 = vpop.f32.mrf.mxu0
    %v164 = vadd.f32 %v138, %v163
    %165 = vmatmul.f32.gmra.mxu0 %v144
    %v166 = vpop.f32.mrf.mxu0
    %v167 = vadd.f32 %v138, %v166
    %168 = vdwg.mxu0
    %v169 = vmax.f32 %v164, 0.0
    %v170 = vmax.f32 %v167, 0.0
    %v171 = vld [vmem:[#allocation8] sm:$0xff]
    %v172 = vld [vmem:[#allocation8 + $0x8] sm:$0xff]
    %v173 = vld [vmem:[#allocation8 + $0x10] sm:$0xff]
    %v174 = vld [vmem:[#allocation8 + $0x18] sm:$0xff]
    %v175 = vld [vmem:[%s6] sm:$0x1]
    %v177 = vperm.slane %v175, 0
    %v180 = vsel %vm100, %v169, 0
    %v183 = vsel %vm100, %v170, 0
    %185 = vmatpush.msra.mxu0 0.0
    %186 = vmatpush.msra.mxu0 0.0
    %187 = vmatpush.msra.mxu0 0.0
    %188 = vmatpush.msra.mxu0 0.0
    %189 = vmatpush.msra.mxu0 0.0
    %190 = vmatpush.msra.mxu0 0.0
    %191 = vmatpush.msra.mxu0 0.0
    %192 = vmatpush.msra.mxu0 0.0
    %193 = vmatpush.msra.mxu0 0.0
    %194 = vmatpush.msra.mxu0 0.0
    %195 = vmatpush.msra.mxu0 0.0
    %196 = vmatpush.msra.mxu0 0.0
    %197 = vmatpush.msra.mxu0 %v174
    %198 = vmatpush.msra.mxu0 %v173
    %199 = vmatpush.msra.mxu0 %v172
    %200 = vmatpush.msra.mxu0 %v171
    %201 = vmatmul.f32.gmra.mxu0 %v180
    %v202 = vpop.f32.mrf.mxu0
    %v203 = vadd.f32 %v177, %v202
    %204 = vmatmul.f32.gmra.mxu0 %v183
    %v205 = vpop.f32.mrf.mxu0
    %v206 = vadd.f32 %v177, %v205
    %207 = vdwg.mxu0
    %208 = vst [vmem:[#allocation10] sm:$0xff] %v203
    %209 = vst [vmem:[#allocation10 + $0x8] sm:$0xff] %v206
    // Predicated region
    $region46: #{tpu_custom_call.1} parent=1 // pred_check
      _
    $region47: #{tpu_custom_call.1} parent=1 // pred_check_branch
      %211 = sbr.rel (0) target = $region49
    $region48: #{tpu_custom_call.1} parent=1 // pred_region
      %213 = vsyncadd [#allocation4], 0
      %s214 = sshll.u32 [#allocation10], 4
      %s215 = int_to_ptr.vmem [resolvable:$true] %s214
      %s216 = sshll.u32 %s7, 4
      %s217 = int_to_ptr.hbm [resolvable:$true] %s216
      %222 = dma.vmem_to_hbm [thread:$0]  %s215, 256, %s217, [#allocation4], 128, 128, 8
    $region49: #{tpu_custom_call.1} parent=1 // pred_fallthru
      _
    // Predicated region
    $region50: #{tpu_custom_call.1} parent=1 // pred_check
      _
    $region51: #{tpu_custom_call.1} parent=1 // pred_check_branch
      %224 = sbr.rel (0) target = $region53
    $region52: #{tpu_custom_call.1} parent=1 // pred_region
      %226 = dma.done [#allocation4], 256
    $region53: #{tpu_custom_call.1} parent=1 // pred_fallthru
      _
    %227 = vsyncpa [#allocation3], 1
    %228 = vsyncpa [#allocation6], 1
    %229 = vsyncpa [#allocation9], 1
    %230 = vsyncpa [#allocation4], 1

</llo_original>
